<compile_context>
chip_gen: v7x
topology: tpu7x:2x2x1
jax: 0.10.0
libtpu: 0.0.40
codegen_flags: <defaults>
</compile_context>

<pallas_src>
import functools

import jax
import jax.numpy as jnp
from jax.experimental import pallas as pl
from jax.experimental.pallas import tpu as pltpu


def _round_up(n, m):
    return (n + m - 1) // m * m


def _pick_bt(B, max_bt=8):
    """Images per grid step: pack as many as possible (amortize per-step
    pipeline overhead) while keeping >= 2 grid points so v7x's two
    TensorCores both get work."""
    cap = min(max_bt, max(1, B // 2))
    for bt in range(cap, 0, -1):
        if B % bt == 0:
            return bt
    return 1


def _two_conv_kernel(x_ref, w1_ref, w2_ref, o_ref, *, H, W):
    # x_ref : (Bt, C_in_p, H*W)    Bt images; channels on sublanes, pixels on lanes.
    # w1_ref: (hidden_p, 9*C_in_p)   conv1 weights, K ordered (kh, kw, c_in)
    # w2_ref: (C_out, 9*hidden_p)    conv2 weights, K ordered (kh, kw, hidden)
    # o_ref : (Bt, C_out, H*W)
    HW = H * W
    Bt = x_ref.shape[0]

    # Hoisted horizontal-boundary masks: the tap reading column-1 / column+1
    # is invalid in the first / last image column.  Computed once, shared by
    # both convs and all Bt images (2 selects per conv instead of 6).
    px = jax.lax.broadcasted_iota(jnp.int32, (1, HW), 1) % W
    ok_left = px >= 1          # reading column - 1 is in-bounds
    ok_right = px < (W - 1)    # reading column + 1 is in-bounds

    w1 = w1_ref[...]
    w2 = w2_ref[...]

    def shift_flat(a, s):
        # result[:, p] = a[:, p + s], zero-filled off the ends of the flat axis
        # (this is exactly the padding=1 behaviour for vertical taps).
        C = a.shape[0]
        if s == 0:
            return a
        if s > 0:
            return jnp.concatenate([a[:, s:], jnp.zeros((C, s), a.dtype)], axis=1)
        return jnp.concatenate([jnp.zeros((C, -s), a.dtype), a[:, :s]], axis=1)

    def conv3x3(act, w_flat):
        # act: (C, HW) f32  ->  (O, HW) f32.  Single MXU matmul with K = 9*C.
        # Build the 3 column-shifted (+masked) bases once; the 3 vertical
        # shifts of each base are then plain lane shifts with zero fill.
        bases = (jnp.where(ok_left, shift_flat(act, -1), 0.0),   # dx = -1
                 act,                                            # dx =  0
                 jnp.where(ok_right, shift_flat(act, 1), 0.0))   # dx = +1
        slabs = []
        for kh in range(3):
            dy = kh - 1
            for kw in range(3):
                slabs.append(shift_flat(bases[kw], dy * W))
        patches = jnp.concatenate(slabs, axis=0)                 # (9*C, HW)
        return jnp.dot(w_flat, patches, preferred_element_type=jnp.float32)

    # Static (unrolled) loop over the Bt images packed into this grid step.
    for b in range(Bt):
        h = jnp.maximum(conv3x3(x_ref[b].astype(jnp.float32), w1), 0.0)
        o_ref[b] = conv3x3(h, w2).astype(o_ref.dtype)


@jax.jit
def two_conv_adapter(x_nchw, w1_oihw, w2_oihw):
    """x: (B, C_in, H, W); w1: (hidden, C_in, 3, 3); w2: (C_out, hidden, 3, 3)."""
    B, c_in, H, W = x_nchw.shape
    hidden = w1_oihw.shape[0]
    c_out = w2_oihw.shape[0]
    HW = H * W

    # Pad c_in / hidden up to full sublane groups (multiples of 8) so every
    # tap slab in the kernel's im2col concat is sublane-aligned.  The padded
    # channels carry zero weights, so numerics are unchanged.
    c_in_p = _round_up(c_in, 8)
    hidden_p = _round_up(hidden, 8)

    # NCHW already has channels leading per image -> just merge H,W (cheap
    # contiguous reshape), then zero-pad the (tiny) channel axis.
    x_flat = x_nchw.reshape(B, c_in, HW)
    if c_in_p != c_in:
        x_flat = jnp.pad(x_flat, ((0, 0), (0, c_in_p - c_in), (0, 0)))

    # (O, I, kh, kw) -> (O, kh, kw, I) -> (O, 9*I): matches the kernel's
    # tap-major, channel-minor im2col K ordering.
    w1p = jnp.pad(w1_oihw, ((0, hidden_p - hidden), (0, c_in_p - c_in),
                            (0, 0), (0, 0)))
    w2p = jnp.pad(w2_oihw, ((0, 0), (0, hidden_p - hidden), (0, 0), (0, 0)))
    w1f = jnp.transpose(w1p, (0, 2, 3, 1)).reshape(hidden_p, 9 * c_in_p)
    w2f = jnp.transpose(w2p, (0, 2, 3, 1)).reshape(c_out, 9 * hidden_p)

    # Sub-batch packing: several images per grid step to amortize the ~0.35us
    # per-step pipeline overhead, while keeping the grid >= 2 for v7x megacore.
    Bt = _pick_bt(B)

    kernel = functools.partial(_two_conv_kernel, H=H, W=W)

    # NOTE(production scaling): at production C / H*W, split the spatial block
    # along rows with a 1-row halo, mark the (constant-index) weight specs
    # single-buffered (pipeline_mode=pl.Buffered(1)) or store them bf16,
    # replace the 9x patches slab with 3 per-kernel-row matmuls accumulated in
    # an f32 VMEM scratch, and set vmem_limit_bytes explicitly against v7x's
    # 32 MiB scoped VMEM.  At adapter sizes (a few KiB per block) none of that
    # is on the critical path.
    out_flat = pl.pallas_call(
        kernel,
        out_shape=jax.ShapeDtypeStruct((B, c_out, HW), x_nchw.dtype),
        grid_spec=pltpu.PrefetchScalarGridSpec(
            num_scalar_prefetch=0,
            grid=(B // Bt,),
            in_specs=[
                pl.BlockSpec((Bt, c_in_p, HW), lambda i: (i, 0, 0)),
                pl.BlockSpec((hidden_p, 9 * c_in_p), lambda i: (0, 0)),
                pl.BlockSpec((c_out, 9 * hidden_p), lambda i: (0, 0)),
            ],
            out_specs=pl.BlockSpec((Bt, c_out, HW), lambda i: (i, 0, 0)),
        ),
        compiler_params=pltpu.CompilerParams(
            dimension_semantics=("parallel",)),
    )(x_flat, w1f, w2f)

    return out_flat.reshape(B, c_out, H, W)


def _reference(x_nchw, w1_oihw, w2_oihw):
    """Pure-JAX reference (lax conv, NCHW / OIHW) for correctness checking."""
    dn1 = jax.lax.conv_dimension_numbers(x_nchw.shape, w1_oihw.shape,
                                         ("NCHW", "OIHW", "NCHW"))
    h = jax.lax.conv_general_dilated(x_nchw, w1_oihw, (1, 1),
                                     ((1, 1), (1, 1)), dimension_numbers=dn1)
    h = jnp.maximum(h, 0.0)
    dn2 = jax.lax.conv_dimension_numbers(h.shape, w2_oihw.shape,
                                         ("NCHW", "OIHW", "NCHW"))
    return jax.lax.conv_general_dilated(h, w2_oihw, (1, 1),
                                        ((1, 1), (1, 1)), dimension_numbers=dn2)


if __name__ == "__main__":
    # Small deterministic example consistent with TwoConvAdapter(c_in=4, c_out=8).
    # B=4 exercises the sub-batch packing (Bt=2 images per step, 2 grid steps).
    B, c_in, c_out, H, W = 4, 4, 8, 16, 16
    hidden = max(c_in, c_out)

    key = jax.random.PRNGKey(0)
    kx, k1, k2 = jax.random.split(key, 3)
    x = jax.random.normal(kx, (B, c_in, H, W), dtype=jnp.float32)
    # PyTorch Conv2d weight layout (O, I, kh, kw), Kaiming-ish scaling.
    w1 = jax.random.normal(k1, (hidden, c_in, 3, 3), dtype=jnp.float32) * (
        (2.0 / (9 * c_in)) ** 0.5)
    w2 = jax.random.normal(k2, (c_out, hidden, 3, 3), dtype=jnp.float32) * (
        (2.0 / (9 * hidden)) ** 0.5)

    out = two_conv_adapter(x, w1, w2)
    out = jax.block_until_ready(out)

    ref = _reference(x, w1, w2)
    assert out.shape == (B, c_out, H, W)
    assert jnp.allclose(out, ref, rtol=1e-3, atol=1e-3)

    print("KERNEL_OK")
</pallas_src>

<mosaic_0001>
module attributes {stable_mosaic.version = 11 : i64} {
  func.func @_two_conv_kernel(%arg0: i32, %arg1: memref<2x8x256xf32, #tpu.memory_space<vmem>>, %arg2: memref<8x72xf32, #tpu.memory_space<vmem>>, %arg3: memref<8x72xf32, #tpu.memory_space<vmem>>, %arg4: memref<2x8x256xf32, #tpu.memory_space<vmem>>) attributes {dimension_semantics = [#tpu.dimension_semantics<parallel>], iteration_bounds = array<i64: 2>, scalar_prefetch = 0 : i64, scratch_operands = 0 : i64, tpu.core_type = #tpu.core_type<tc>, window_params = [{transform_indices = @transform_0, window_bounds = array<i64: 2, 8, 256>}, {pipeline_mode = #tpu.pipeline_mode<synchronous>, transform_indices = @transform_1, window_bounds = array<i64: 8, 72>}, {pipeline_mode = #tpu.pipeline_mode<synchronous>, transform_indices = @transform_2, window_bounds = array<i64: 8, 72>}, {transform_indices = @transform_3, window_bounds = array<i64: 2, 8, 256>}]} {
    %0 = tpu.iota {dimensions = array<i32: 1>} : vector<1x256xi32>
    %c16_i32 = arith.constant 16 : i32
    %c0_i32 = arith.constant 0 : i32
    %1 = arith.cmpi eq, %c16_i32, %c0_i32 : i32
    %c1_i32 = arith.constant 1 : i32
    %2 = arith.select %1, %c1_i32, %c16_i32 : i32
    %3 = vector.broadcast %2 : i32 to vector<1x256xi32>
    %4 = arith.remsi %0, %3 : vector<1x256xi32>
    %c0_i32_0 = arith.constant 0 : i32
    %5 = vector.broadcast %c0_i32_0 : i32 to vector<1x256xi32>
    %6 = arith.cmpi ne, %4, %5 : vector<1x256xi32>
    %c0_i32_1 = arith.constant 0 : i32
    %7 = vector.broadcast %c0_i32_1 : i32 to vector<1x256xi32>
    %8 = arith.cmpi slt, %4, %7 : vector<1x256xi32>
    %c0_i32_2 = arith.constant 0 : i32
    %9 = arith.cmpi slt, %2, %c0_i32_2 : i32
    %10 = vector.broadcast %9 : i1 to vector<1x256xi1>
    %11 = vector.broadcast %10 : vector<1x256xi1> to vector<1x256xi1>
    %12 = arith.xori %8, %11 : vector<1x256xi1>
    %13 = arith.andi %12, %6 : vector<1x256xi1>
    %14 = vector.broadcast %2 : i32 to vector<1x256xi32>
    %15 = arith.addi %4, %14 : vector<1x256xi32>
    %16 = arith.select %13, %15, %4 : vector<1x256xi1>, vector<1x256xi32>
    %c1_i32_3 = arith.constant 1 : i32
    %17 = vector.broadcast %c1_i32_3 : i32 to vector<1x256xi32>
    %18 = arith.cmpi sge, %16, %17 : vector<1x256xi32>
    %c15_i32 = arith.constant 15 : i32
    %19 = vector.broadcast %c15_i32 : i32 to vector<1x256xi32>
    %20 = arith.cmpi slt, %16, %19 : vector<1x256xi32>
    %c0 = arith.constant 0 : index
    %c0_4 = arith.constant 0 : index
    %21 = vector.load %arg2[%c0, %c0_4] : memref<8x72xf32, #tpu.memory_space<vmem>>, vector<8x72xf32>
    %c0_5 = arith.constant 0 : index
    %c0_6 = arith.constant 0 : index
    %22 = vector.load %arg3[%c0_5, %c0_6] : memref<8x72xf32, #tpu.memory_space<vmem>>, vector<8x72xf32>
    %c0_7 = arith.constant 0 : index
    %c0_8 = arith.constant 0 : index
    %c0_9 = arith.constant 0 : index
    %23 = vector.load %arg1[%c0_7, %c0_8, %c0_9] : memref<2x8x256xf32, #tpu.memory_space<vmem>>, vector<1x8x256xf32>
    %24 = vector.shape_cast %23 : vector<1x8x256xf32> to vector<8x256xf32>
    %cst = arith.constant 0.000000e+00 : f32
    %25 = vector.broadcast %cst : f32 to vector<8x1xf32>
    %26 = vector.extract_strided_slice %24 {offsets = [0, 0], sizes = [8, 255], strides = [1, 1]} : vector<8x256xf32> to vector<8x255xf32>
    %27 = tpu.concatenate %25, %26 in 1 : vector<8x1xf32>, vector<8x255xf32> -> vector<8x256xf32>
    %cst_10 = arith.constant 0.000000e+00 : f32
    %28 = vector.shape_cast %18 : vector<1x256xi1> to vector<1x256xi1>
    %29 = vector.broadcast %28 : vector<1x256xi1> to vector<8x256xi1>
    %30 = vector.broadcast %cst_10 : f32 to vector<8x256xf32>
    %31 = arith.select %29, %27, %30 : vector<8x256xi1>, vector<8x256xf32>
    %32 = vector.extract_strided_slice %24 {offsets = [0, 1], sizes = [8, 255], strides = [1, 1]} : vector<8x256xf32> to vector<8x255xf32>
    %cst_11 = arith.constant 0.000000e+00 : f32
    %33 = vector.broadcast %cst_11 : f32 to vector<8x1xf32>
    %34 = tpu.concatenate %32, %33 in 1 : vector<8x255xf32>, vector<8x1xf32> -> vector<8x256xf32>
    %cst_12 = arith.constant 0.000000e+00 : f32
    %35 = vector.shape_cast %20 : vector<1x256xi1> to vector<1x256xi1>
    %36 = vector.broadcast %35 : vector<1x256xi1> to vector<8x256xi1>
    %37 = vector.broadcast %cst_12 : f32 to vector<8x256xf32>
    %38 = arith.select %36, %34, %37 : vector<8x256xi1>, vector<8x256xf32>
    %cst_13 = arith.constant 0.000000e+00 : f32
    %39 = vector.broadcast %cst_13 : f32 to vector<8x16xf32>
    %40 = vector.extract_strided_slice %31 {offsets = [0, 0], sizes = [8, 240], strides = [1, 1]} : vector<8x256xf32> to vector<8x240xf32>
    %41 = tpu.concatenate %39, %40 in 1 : vector<8x16xf32>, vector<8x240xf32> -> vector<8x256xf32>
    %cst_14 = arith.constant 0.000000e+00 : f32
    %42 = vector.broadcast %cst_14 : f32 to vector<8x16xf32>
    %43 = vector.extract_strided_slice %24 {offsets = [0, 0], sizes = [8, 240], strides = [1, 1]} : vector<8x256xf32> to vector<8x240xf32>
    %44 = tpu.concatenate %42, %43 in 1 : vector<8x16xf32>, vector<8x240xf32> -> vector<8x256xf32>
    %cst_15 = arith.constant 0.000000e+00 : f32
    %45 = vector.broadcast %cst_15 : f32 to vector<8x16xf32>
    %46 = vector.extract_strided_slice %38 {offsets = [0, 0], sizes = [8, 240], strides = [1, 1]} : vector<8x256xf32> to vector<8x240xf32>
    %47 = tpu.concatenate %45, %46 in 1 : vector<8x16xf32>, vector<8x240xf32> -> vector<8x256xf32>
    %48 = vector.extract_strided_slice %31 {offsets = [0, 16], sizes = [8, 240], strides = [1, 1]} : vector<8x256xf32> to vector<8x240xf32>
    %cst_16 = arith.constant 0.000000e+00 : f32
    %49 = vector.broadcast %cst_16 : f32 to vector<8x16xf32>
    %50 = tpu.concatenate %48, %49 in 1 : vector<8x240xf32>, vector<8x16xf32> -> vector<8x256xf32>
    %51 = vector.extract_strided_slice %24 {offsets = [0, 16], sizes = [8, 240], strides = [1, 1]} : vector<8x256xf32> to vector<8x240xf32>
    %cst_17 = arith.constant 0.000000e+00 : f32
    %52 = vector.broadcast %cst_17 : f32 to vector<8x16xf32>
    %53 = tpu.concatenate %51, %52 in 1 : vector<8x240xf32>, vector<8x16xf32> -> vector<8x256xf32>
    %54 = vector.extract_strided_slice %38 {offsets = [0, 16], sizes = [8, 240], strides = [1, 1]} : vector<8x256xf32> to vector<8x240xf32>
    %cst_18 = arith.constant 0.000000e+00 : f32
    %55 = vector.broadcast %cst_18 : f32 to vector<8x16xf32>
    %56 = tpu.concatenate %54, %55 in 1 : vector<8x240xf32>, vector<8x16xf32> -> vector<8x256xf32>
    %57 = tpu.concatenate %41, %44, %47, %31, %24, %38, %50, %53, %56 in 0 : vector<8x256xf32>, vector<8x256xf32>, vector<8x256xf32>, vector<8x256xf32>, vector<8x256xf32>, vector<8x256xf32>, vector<8x256xf32>, vector<8x256xf32>, vector<8x256xf32> -> vector<72x256xf32>
    %cst_19 = arith.constant dense<0.000000e+00> : vector<8x256xf32>
    %58 = tpu.matmul %21, %57, %cst_19 {dimension_numbers = #tpu.dot_dimension_numbers<[1], [0], [0], [1], [0, 0, 1, 1], [], []>} : vector<8x72xf32>, vector<72x256xf32>, vector<8x256xf32> -> vector<8x256xf32>
    %cst_20 = arith.constant 0.000000e+00 : f32
    %59 = vector.broadcast %cst_20 : f32 to vector<8x256xf32>
    %60 = arith.maximumf %58, %59 : vector<8x256xf32>
    %cst_21 = arith.constant 0.000000e+00 : f32
    %61 = vector.broadcast %cst_21 : f32 to vector<8x1xf32>
    %62 = vector.extract_strided_slice %60 {offsets = [0, 0], sizes = [8, 255], strides = [1, 1]} : vector<8x256xf32> to vector<8x255xf32>
    %63 = tpu.concatenate %61, %62 in 1 : vector<8x1xf32>, vector<8x255xf32> -> vector<8x256xf32>
    %cst_22 = arith.constant 0.000000e+00 : f32
    %64 = vector.shape_cast %18 : vector<1x256xi1> to vector<1x256xi1>
    %65 = vector.broadcast %64 : vector<1x256xi1> to vector<8x256xi1>
    %66 = vector.broadcast %cst_22 : f32 to vector<8x256xf32>
    %67 = arith.select %65, %63, %66 : vector<8x256xi1>, vector<8x256xf32>
    %68 = vector.extract_strided_slice %60 {offsets = [0, 1], sizes = [8, 255], strides = [1, 1]} : vector<8x256xf32> to vector<8x255xf32>
    %cst_23 = arith.constant 0.000000e+00 : f32
    %69 = vector.broadcast %cst_23 : f32 to vector<8x1xf32>
    %70 = tpu.concatenate %68, %69 in 1 : vector<8x255xf32>, vector<8x1xf32> -> vector<8x256xf32>
    %cst_24 = arith.constant 0.000000e+00 : f32
    %71 = vector.shape_cast %20 : vector<1x256xi1> to vector<1x256xi1>
    %72 = vector.broadcast %71 : vector<1x256xi1> to vector<8x256xi1>
    %73 = vector.broadcast %cst_24 : f32 to vector<8x256xf32>
    %74 = arith.select %72, %70, %73 : vector<8x256xi1>, vector<8x256xf32>
    %cst_25 = arith.constant 0.000000e+00 : f32
    %75 = vector.broadcast %cst_25 : f32 to vector<8x16xf32>
    %76 = vector.extract_strided_slice %67 {offsets = [0, 0], sizes = [8, 240], strides = [1, 1]} : vector<8x256xf32> to vector<8x240xf32>
    %77 = tpu.concatenate %75, %76 in 1 : vector<8x16xf32>, vector<8x240xf32> -> vector<8x256xf32>
    %cst_26 = arith.constant 0.000000e+00 : f32
    %78 = vector.broadcast %cst_26 : f32 to vector<8x16xf32>
    %79 = vector.extract_strided_slice %60 {offsets = [0, 0], sizes = [8, 240], strides = [1, 1]} : vector<8x256xf32> to vector<8x240xf32>
    %80 = tpu.concatenate %78, %79 in 1 : vector<8x16xf32>, vector<8x240xf32> -> vector<8x256xf32>
    %cst_27 = arith.constant 0.000000e+00 : f32
    %81 = vector.broadcast %cst_27 : f32 to vector<8x16xf32>
    %82 = vector.extract_strided_slice %74 {offsets = [0, 0], sizes = [8, 240], strides = [1, 1]} : vector<8x256xf32> to vector<8x240xf32>
    %83 = tpu.concatenate %81, %82 in 1 : vector<8x16xf32>, vector<8x240xf32> -> vector<8x256xf32>
    %84 = vector.extract_strided_slice %67 {offsets = [0, 16], sizes = [8, 240], strides = [1, 1]} : vector<8x256xf32> to vector<8x240xf32>
    %cst_28 = arith.constant 0.000000e+00 : f32
    %85 = vector.broadcast %cst_28 : f32 to vector<8x16xf32>
    %86 = tpu.concatenate %84, %85 in 1 : vector<8x240xf32>, vector<8x16xf32> -> vector<8x256xf32>
    %87 = vector.extract_strided_slice %60 {offsets = [0, 16], sizes = [8, 240], strides = [1, 1]} : vector<8x256xf32> to vector<8x240xf32>
    %cst_29 = arith.constant 0.000000e+00 : f32
    %88 = vector.broadcast %cst_29 : f32 to vector<8x16xf32>
    %89 = tpu.concatenate %87, %88 in 1 : vector<8x240xf32>, vector<8x16xf32> -> vector<8x256xf32>
    %90 = vector.extract_strided_slice %74 {offsets = [0, 16], sizes = [8, 240], strides = [1, 1]} : vector<8x256xf32> to vector<8x240xf32>
    %cst_30 = arith.constant 0.000000e+00 : f32
    %91 = vector.broadcast %cst_30 : f32 to vector<8x16xf32>
    %92 = tpu.concatenate %90, %91 in 1 : vector<8x240xf32>, vector<8x16xf32> -> vector<8x256xf32>
    %93 = tpu.concatenate %77, %80, %83, %67, %60, %74, %86, %89, %92 in 0 : vector<8x256xf32>, vector<8x256xf32>, vector<8x256xf32>, vector<8x256xf32>, vector<8x256xf32>, vector<8x256xf32>, vector<8x256xf32>, vector<8x256xf32>, vector<8x256xf32> -> vector<72x256xf32>
    %cst_31 = arith.constant dense<0.000000e+00> : vector<8x256xf32>
    %94 = tpu.matmul %22, %93, %cst_31 {dimension_numbers = #tpu.dot_dimension_numbers<[1], [0], [0], [1], [0, 0, 1, 1], [], []>} : vector<8x72xf32>, vector<72x256xf32>, vector<8x256xf32> -> vector<8x256xf32>
    %c0_32 = arith.constant 0 : index
    %c0_33 = arith.constant 0 : index
    %c0_34 = arith.constant 0 : index
    %95 = vector.load %arg4[%c0_32, %c0_33, %c0_34] : memref<2x8x256xf32, #tpu.memory_space<vmem>>, vector<1x8x256xf32>
    %96 = vector.shape_cast %95 : vector<1x8x256xf32> to vector<8x256xf32>
    %97 = vector.shape_cast %94 : vector<8x256xf32> to vector<1x8x256xf32>
    tpu.vector_store %arg4[%c0_32, %c0_33, %c0_34], %97 {strides = array<i32>} : memref<2x8x256xf32, #tpu.memory_space<vmem>>, vector<1x8x256xf32>,
    %c1 = arith.constant 1 : index
    %c0_35 = arith.constant 0 : index
    %c0_36 = arith.constant 0 : index
    %98 = vector.load %arg1[%c1, %c0_35, %c0_36] : memref<2x8x256xf32, #tpu.memory_space<vmem>>, vector<1x8x256xf32>
    %99 = vector.shape_cast %98 : vector<1x8x256xf32> to vector<8x256xf32>
    %cst_37 = arith.constant 0.000000e+00 : f32
    %100 = vector.broadcast %cst_37 : f32 to vector<8x1xf32>
    %101 = vector.extract_strided_slice %99 {offsets = [0, 0], sizes = [8, 255], strides = [1, 1]} : vector<8x256xf32> to vector<8x255xf32>
    %102 = tpu.concatenate %100, %101 in 1 : vector<8x1xf32>, vector<8x255xf32> -> vector<8x256xf32>
    %cst_38 = arith.constant 0.000000e+00 : f32
    %103 = vector.shape_cast %18 : vector<1x256xi1> to vector<1x256xi1>
    %104 = vector.broadcast %103 : vector<1x256xi1> to vector<8x256xi1>
    %105 = vector.broadcast %cst_38 : f32 to vector<8x256xf32>
    %106 = arith.select %104, %102, %105 : vector<8x256xi1>, vector<8x256xf32>
    %107 = vector.extract_strided_slice %99 {offsets = [0, 1], sizes = [8, 255], strides = [1, 1]} : vector<8x256xf32> to vector<8x255xf32>
    %cst_39 = arith.constant 0.000000e+00 : f32
    %108 = vector.broadcast %cst_39 : f32 to vector<8x1xf32>
    %109 = tpu.concatenate %107, %108 in 1 : vector<8x255xf32>, vector<8x1xf32> -> vector<8x256xf32>
    %cst_40 = arith.constant 0.000000e+00 : f32
    %110 = vector.shape_cast %20 : vector<1x256xi1> to vector<1x256xi1>
    %111 = vector.broadcast %110 : vector<1x256xi1> to vector<8x256xi1>
    %112 = vector.broadcast %cst_40 : f32 to vector<8x256xf32>
    %113 = arith.select %111, %109, %112 : vector<8x256xi1>, vector<8x256xf32>
    %cst_41 = arith.constant 0.000000e+00 : f32
    %114 = vector.broadcast %cst_41 : f32 to vector<8x16xf32>
    %115 = vector.extract_strided_slice %106 {offsets = [0, 0], sizes = [8, 240], strides = [1, 1]} : vector<8x256xf32> to vector<8x240xf32>
    %116 = tpu.concatenate %114, %115 in 1 : vector<8x16xf32>, vector<8x240xf32> -> vector<8x256xf32>
    %cst_42 = arith.constant 0.000000e+00 : f32
    %117 = vector.broadcast %cst_42 : f32 to vector<8x16xf32>
    %118 = vector.extract_strided_slice %99 {offsets = [0, 0], sizes = [8, 240], strides = [1, 1]} : vector<8x256xf32> to vector<8x240xf32>
    %119 = tpu.concatenate %117, %118 in 1 : vector<8x16xf32>, vector<8x240xf32> -> vector<8x256xf32>
    %cst_43 = arith.constant 0.000000e+00 : f32
    %120 = vector.broadcast %cst_43 : f32 to vector<8x16xf32>
    %121 = vector.extract_strided_slice %113 {offsets = [0, 0], sizes = [8, 240], strides = [1, 1]} : vector<8x256xf32> to vector<8x240xf32>
    %122 = tpu.concatenate %120, %121 in 1 : vector<8x16xf32>, vector<8x240xf32> -> vector<8x256xf32>
    %123 = vector.extract_strided_slice %106 {offsets = [0, 16], sizes = [8, 240], strides = [1, 1]} : vector<8x256xf32> to vector<8x240xf32>
    %cst_44 = arith.constant 0.000000e+00 : f32
    %124 = vector.broadcast %cst_44 : f32 to vector<8x16xf32>
    %125 = tpu.concatenate %123, %124 in 1 : vector<8x240xf32>, vector<8x16xf32> -> vector<8x256xf32>
    %126 = vector.extract_strided_slice %99 {offsets = [0, 16], sizes = [8, 240], strides = [1, 1]} : vector<8x256xf32> to vector<8x240xf32>
    %cst_45 = arith.constant 0.000000e+00 : f32
    %127 = vector.broadcast %cst_45 : f32 to vector<8x16xf32>
    %128 = tpu.concatenate %126, %127 in 1 : vector<8x240xf32>, vector<8x16xf32> -> vector<8x256xf32>
    %129 = vector.extract_strided_slice %113 {offsets = [0, 16], sizes = [8, 240], strides = [1, 1]} : vector<8x256xf32> to vector<8x240xf32>
    %cst_46 = arith.constant 0.000000e+00 : f32
    %130 = vector.broadcast %cst_46 : f32 to vector<8x16xf32>
    %131 = tpu.concatenate %129, %130 in 1 : vector<8x240xf32>, vector<8x16xf32> -> vector<8x256xf32>
    %132 = tpu.concatenate %116, %119, %122, %106, %99, %113, %125, %128, %131 in 0 : vector<8x256xf32>, vector<8x256xf32>, vector<8x256xf32>, vector<8x256xf32>, vector<8x256xf32>, vector<8x256xf32>, vector<8x256xf32>, vector<8x256xf32>, vector<8x256xf32> -> vector<72x256xf32>
    %cst_47 = arith.constant dense<0.000000e+00> : vector<8x256xf32>
    %133 = tpu.matmul %21, %132, %cst_47 {dimension_numbers = #tpu.dot_dimension_numbers<[1], [0], [0], [1], [0, 0, 1, 1], [], []>} : vector<8x72xf32>, vector<72x256xf32>, vector<8x256xf32> -> vector<8x256xf32>
    %cst_48 = arith.constant 0.000000e+00 : f32
    %134 = vector.broadcast %cst_48 : f32 to vector<8x256xf32>
    %135 = arith.maximumf %133, %134 : vector<8x256xf32>
    %cst_49 = arith.constant 0.000000e+00 : f32
    %136 = vector.broadcast %cst_49 : f32 to vector<8x1xf32>
    %137 = vector.extract_strided_slice %135 {offsets = [0, 0], sizes = [8, 255], strides = [1, 1]} : vector<8x256xf32> to vector<8x255xf32>
    %138 = tpu.concatenate %136, %137 in 1 : vector<8x1xf32>, vector<8x255xf32> -> vector<8x256xf32>
    %cst_50 = arith.constant 0.000000e+00 : f32
    %139 = vector.shape_cast %18 : vector<1x256xi1> to vector<1x256xi1>
    %140 = vector.broadcast %139 : vector<1x256xi1> to vector<8x256xi1>
    %141 = vector.broadcast %cst_50 : f32 to vector<8x256xf32>
    %142 = arith.select %140, %138, %141 : vector<8x256xi1>, vector<8x256xf32>
    %143 = vector.extract_strided_slice %135 {offsets = [0, 1], sizes = [8, 255], strides = [1, 1]} : vector<8x256xf32> to vector<8x255xf32>
    %cst_51 = arith.constant 0.000000e+00 : f32
    %144 = vector.broadcast %cst_51 : f32 to vector<8x1xf32>
    %145 = tpu.concatenate %143, %144 in 1 : vector<8x255xf32>, vector<8x1xf32> -> vector<8x256xf32>
    %cst_52 = arith.constant 0.000000e+00 : f32
    %146 = vector.shape_cast %20 : vector<1x256xi1> to vector<1x256xi1>
    %147 = vector.broadcast %146 : vector<1x256xi1> to vector<8x256xi1>
    %148 = vector.broadcast %cst_52 : f32 to vector<8x256xf32>
    %149 = arith.select %147, %145, %148 : vector<8x256xi1>, vector<8x256xf32>
    %cst_53 = arith.constant 0.000000e+00 : f32
    %150 = vector.broadcast %cst_53 : f32 to vector<8x16xf32>
    %151 = vector.extract_strided_slice %142 {offsets = [0, 0], sizes = [8, 240], strides = [1, 1]} : vector<8x256xf32> to vector<8x240xf32>
    %152 = tpu.concatenate %150, %151 in 1 : vector<8x16xf32>, vector<8x240xf32> -> vector<8x256xf32>
    %cst_54 = arith.constant 0.000000e+00 : f32
    %153 = vector.broadcast %cst_54 : f32 to vector<8x16xf32>
    %154 = vector.extract_strided_slice %135 {offsets = [0, 0], sizes = [8, 240], strides = [1, 1]} : vector<8x256xf32> to vector<8x240xf32>
    %155 = tpu.concatenate %153, %154 in 1 : vector<8x16xf32>, vector<8x240xf32> -> vector<8x256xf32>
    %cst_55 = arith.constant 0.000000e+00 : f32
    %156 = vector.broadcast %cst_55 : f32 to vector<8x16xf32>
    %157 = vector.extract_strided_slice %149 {offsets = [0, 0], sizes = [8, 240], strides = [1, 1]} : vector<8x256xf32> to vector<8x240xf32>
    %158 = tpu.concatenate %156, %157 in 1 : vector<8x16xf32>, vector<8x240xf32> -> vector<8x256xf32>
    %159 = vector.extract_strided_slice %142 {offsets = [0, 16], sizes = [8, 240], strides = [1, 1]} : vector<8x256xf32> to vector<8x240xf32>
    %cst_56 = arith.constant 0.000000e+00 : f32
    %160 = vector.broadcast %cst_56 : f32 to vector<8x16xf32>
    %161 = tpu.concatenate %159, %160 in 1 : vector<8x240xf32>, vector<8x16xf32> -> vector<8x256xf32>
    %162 = vector.extract_strided_slice %135 {offsets = [0, 16], sizes = [8, 240], strides = [1, 1]} : vector<8x256xf32> to vector<8x240xf32>
    %cst_57 = arith.constant 0.000000e+00 : f32
    %163 = vector.broadcast %cst_57 : f32 to vector<8x16xf32>
    %164 = tpu.concatenate %162, %163 in 1 : vector<8x240xf32>, vector<8x16xf32> -> vector<8x256xf32>
    %165 = vector.extract_strided_slice %149 {offsets = [0, 16], sizes = [8, 240], strides = [1, 1]} : vector<8x256xf32> to vector<8x240xf32>
    %cst_58 = arith.constant 0.000000e+00 : f32
    %166 = vector.broadcast %cst_58 : f32 to vector<8x16xf32>
    %167 = tpu.concatenate %165, %166 in 1 : vector<8x240xf32>, vector<8x16xf32> -> vector<8x256xf32>
    %168 = tpu.concatenate %152, %155, %158, %142, %135, %149, %161, %164, %167 in 0 : vector<8x256xf32>, vector<8x256xf32>, vector<8x256xf32>, vector<8x256xf32>, vector<8x256xf32>, vector<8x256xf32>, vector<8x256xf32>, vector<8x256xf32>, vector<8x256xf32> -> vector<72x256xf32>
    %cst_59 = arith.constant dense<0.000000e+00> : vector<8x256xf32>
    %169 = tpu.matmul %22, %168, %cst_59 {dimension_numbers = #tpu.dot_dimension_numbers<[1], [0], [0], [1], [0, 0, 1, 1], [], []>} : vector<8x72xf32>, vector<72x256xf32>, vector<8x256xf32> -> vector<8x256xf32>
    %c1_60 = arith.constant 1 : index
    %c0_61 = arith.constant 0 : index
    %c0_62 = arith.constant 0 : index
    %170 = vector.load %arg4[%c1_60, %c0_61, %c0_62] : memref<2x8x256xf32, #tpu.memory_space<vmem>>, vector<1x8x256xf32>
    %171 = vector.shape_cast %170 : vector<1x8x256xf32> to vector<8x256xf32>
    %172 = vector.shape_cast %169 : vector<8x256xf32> to vector<1x8x256xf32>
    tpu.vector_store %arg4[%c1_60, %c0_61, %c0_62], %172 {strides = array<i32>} : memref<2x8x256xf32, #tpu.memory_space<vmem>>, vector<1x8x256xf32>,
    return
  }
  func.func @transform_0(%arg0: i32) -> (i32, i32, i32) {
    %c0_i32 = arith.constant 0 : i32
    %c0_i32_0 = arith.constant 0 : i32
    %c0_i32_1 = arith.constant 0 : i32
    return %arg0, %c0_i32, %c0_i32_0 : i32, i32, i32
  }
  func.func @transform_1(%arg0: i32) -> (i32, i32) {
    %c0_i32 = arith.constant 0 : i32
    %c0_i32_0 = arith.constant 0 : i32
    %c0_i32_1 = arith.constant 0 : i32
    return %c0_i32, %c0_i32_0 : i32, i32
  }
  func.func @transform_2(%arg0: i32) -> (i32, i32) {
    %c0_i32 = arith.constant 0 : i32
    %c0_i32_0 = arith.constant 0 : i32
    %c0_i32_1 = arith.constant 0 : i32
    return %c0_i32, %c0_i32_0 : i32, i32
  }
  func.func @transform_3(%arg0: i32) -> (i32, i32, i32) {
    %c0_i32 = arith.constant 0 : i32
    %c0_i32_0 = arith.constant 0 : i32
    %c0_i32_1 = arith.constant 0 : i32
    return %arg0, %c0_i32, %c0_i32_0 : i32, i32, i32
  }
}

</mosaic_0001>

<llo_original>
// kernel: two_conv_adapter.1
$region0: #{two_conv_adapter.1}
  #allocation0 [shape = 'u32[]', space=smem, size = 0x4, offset = 0x4, fixed_abs, tag = 'smem constant byte address 0x4 - core index']
  #allocation1 [shape = 'u32[144,128]{1,0:T(1,128)}', space=vmem, size = 0x12000, scoped, tag = 'internal scratch']
  %s0 = inlined_call_operand.vmem [shape: f32[4,8,256], index: 0, kind: input, shape index: {}]
  %s1 = inlined_call_operand.vmem [shape: f32[8,72], index: 1, kind: input, shape index: {}]
  %s2 = inlined_call_operand.vmem [shape: f32[8,72], index: 2, kind: input, shape index: {}]
  %s3 = inlined_call_operand.vmem [shape: f32[4,8,256], index: 3, kind: output, shape index: {}]
  %s4 = sld [smem:[#allocation0]]
  $region45: #{two_conv_adapter.1} parent=0
    _
  %s6 = ssub.s32 1, %s4
  %s7 = scalar_select 0, %s6, %s4
  loop: start=0, step=1, limit=4
  $region2: #{two_conv_adapter.1} parent=0 // loop_pre_header
    _
  $region3: #{two_conv_adapter.1} parent=0 // loop_header
    %s9 = sphi 0, %s13
    %p10 = scmp.ge.s32.totalorder %s9, 4
    %s19 = sphi 0, %s21
    %s22 = sphi 0, %s19
    %s23 = sphi 0, %s22
    %s39 = sphi 0, %s23
    %s43 = sphi 0, %s43
    %s45 = sphi 0, %s43
    %s46 = sphi 0, %s45
    %s60 = sphi 0, %s46
    %s64 = sphi 0, %s64
    %s66 = sphi 0, %s64
    %s67 = sphi 0, %s66
    %s81 = sphi 0, %s67
    %s87 = sphi 0, %s89
    %s90 = sphi 0, %s87
    %s91 = sphi 0, %s90
    %s107 = sphi 0, %s91
  $region4: #{two_conv_adapter.1} parent=0 // loop_header_branch
    %12 = sbr.rel (%p10) target = $region8
  $region5: #{two_conv_adapter.1} parent=0 // loop_body
    %s14 = ssub.s32 %s9, 1
    %s15 = ssub.s32 %s9, 2
    %s16 = sadd.s32 %s9, 1
    %s17 = ssub.s32 %s9, %s16
    %p18 = scmp.eq.s32.totalorder %s17, 0
    %s20 = sadd.s32 %s19, 1
    %s21 = scalar_select %p18, %s19, %s20
    %p24 = pneg %p18
    %p25 = scmp.eq.s32.totalorder %s9, 1
    %p26 = por %p24, %p25
    %p27 = scmp.ne.s32.totalorder %s19, %s22
    %p28 = scmp.eq.s32.totalorder %s9, 0
    %p29 = por %p27, %p28
    %p30 = scmp.ne.s32.totalorder %s19, %s22
    %p31 = scmp.eq.s32.totalorder %s14, 1
    %p32 = por %p30, %p31
    %p33 = scmp.ne.s32.totalorder %s22, %s23
    %p34 = scmp.eq.s32.totalorder %s14, 0
    %p35 = por %p33, %p34
    %p36 = scmp.ne.s32.totalorder %s22, %s23
    %p37 = scmp.eq.s32.totalorder %s15, 1
    %p38 = por %p36, %p37
    %p40 = scmp.ne.s32.totalorder %s23, %s39
    %p41 = scmp.eq.s32.totalorder %s15, 0
    %p42 = por %p40, %p41
    %s44 = sadd.s32 %s43, 1
    %p47 = scmp.eq.s32.totalorder %s9, 1
    %p48 = scmp.ne.s32.totalorder %s43, %s45
    %p49 = scmp.eq.s32.totalorder %s9, 0
    %p50 = por %p48, %p49
    %p51 = scmp.ne.s32.totalorder %s43, %s45
    %p52 = scmp.eq.s32.totalorder %s14, 1
    %p53 = por %p51, %p52
    %p54 = scmp.ne.s32.totalorder %s45, %s46
    %p55 = scmp.eq.s32.totalorder %s14, 0
    %p56 = por %p54, %p55
    %p57 = scmp.ne.s32.totalorder %s45, %s46
    %p58 = scmp.eq.s32.totalorder %s15, 1
    %p59 = por %p57, %p58
    %p61 = scmp.ne.s32.totalorder %s46, %s60
    %p62 = scmp.eq.s32.totalorder %s15, 0
    %p63 = por %p61, %p62
    %s65 = sadd.s32 %s64, 1
    %p68 = scmp.eq.s32.totalorder %s9, 1
    %p69 = scmp.ne.s32.totalorder %s64, %s66
    %p70 = scmp.eq.s32.totalorder %s9, 0
    %p71 = por %p69, %p70
    %p72 = scmp.ne.s32.totalorder %s64, %s66
    %p73 = scmp.eq.s32.totalorder %s14, 1
    %p74 = por %p72, %p73
    %p75 = scmp.ne.s32.totalorder %s66, %s67
    %p76 = scmp.eq.s32.totalorder %s14, 0
    %p77 = por %p75, %p76
    %p78 = scmp.ne.s32.totalorder %s66, %s67
    %p79 = scmp.eq.s32.totalorder %s15, 1
    %p80 = por %p78, %p79
    %p82 = scmp.ne.s32.totalorder %s67, %s81
    %p83 = scmp.eq.s32.totalorder %s15, 0
    %p84 = por %p82, %p83
    %s85 = ssub.s32 %s9, %s16
    %p86 = scmp.eq.s32.totalorder %s85, 0
    %s88 = sadd.s32 %s87, 1
    %s89 = scalar_select %p86, %s87, %s88
    %p92 = pneg %p86
    %p93 = scmp.eq.s32.totalorder %s9, 1
    %p94 = por %p92, %p93
    %p95 = scmp.ne.s32.totalorder %s87, %s90
    %p96 = scmp.eq.s32.totalorder %s9, 0
    %p97 = por %p95, %p96
    %p98 = scmp.ne.s32.totalorder %s87, %s90
    %p99 = scmp.eq.s32.totalorder %s14, 1
    %p100 = por %p98, %p99
    %p101 = scmp.ne.s32.totalorder %s90, %s91
    %p102 = scmp.eq.s32.totalorder %s14, 0
    %p103 = por %p101, %p102
    %p104 = scmp.ne.s32.totalorder %s90, %s91
    %p105 = scmp.eq.s32.totalorder %s15, 1
    %p106 = por %p104, %p105
    %p108 = scmp.ne.s32.totalorder %s91, %s107
    %p109 = scmp.eq.s32.totalorder %s15, 0
    %p110 = por %p108, %p109
    %p111 = scmp.le.s32.totalorder 1, %s9
    %p112 = scmp.lt.s32.totalorder %s9, 3
    %p113 = pnand %p111, %p112
    %p114 = pneg %p113
    // Predicated region
    $region9: #{two_conv_adapter.1} parent=5 // pred_check
      _
    $region10: #{two_conv_adapter.1} parent=5 // pred_check_branch
      %116 = sbr.rel (%p113) target = $region12
    $region11: #{two_conv_adapter.1} parent=5 // pred_region
      %s117 = ssub.s32 %s9, 1
      // Predicated region
      $region13: #{two_conv_adapter.1} parent=11 // pred_check
        %p118 = pneg %p56
      $region14: #{two_conv_adapter.1} parent=11 // pred_check_branch
        %120 = sbr.rel (%p118) target = $region16
      $region15: #{two_conv_adapter.1} parent=11 // pred_region
        _
      $region16: #{two_conv_adapter.1} parent=11 // pred_fallthru
        _
      // Predicated region
      $region17: #{two_conv_adapter.1} parent=11 // pred_check
        %p121 = pneg %p77
      $region18: #{two_conv_adapter.1} parent=11 // pred_check_branch
        %123 = sbr.rel (%p121) target = $region20
      $region19: #{two_conv_adapter.1} parent=11 // pred_region
        _
      $region20: #{two_conv_adapter.1} parent=11 // pred_fallthru
        _
    $region12: #{two_conv_adapter.1} parent=5 // pred_fallthru
      _
    %p124 = scmp.lt.s32.totalorder %s9, 2
    // Predicated region
    $region21: #{two_conv_adapter.1} parent=5 // pred_check
      %p125 = pneg %p124
    $region22: #{two_conv_adapter.1} parent=5 // pred_check_branch
      %127 = sbr.rel (%p125) target = $region24
    $region23: #{two_conv_adapter.1} parent=5 // pred_region
      // Predicated region
      $region25: #{two_conv_adapter.1} parent=23 // pred_check
        %p128 = pneg %p29
      $region26: #{two_conv_adapter.1} parent=23 // pred_check_branch
        %130 = sbr.rel (%p128) target = $region28
      $region27: #{two_conv_adapter.1} parent=23 // pred_region
        %s131 = smul.u32 2, %s9
        %p132 = scmp.lt.s32.totalorder %s131, 3
        %s133 = scalar_select %p132, %s131, 3
        %s134 = smul.addr %s133, 2
        %s135 = smul.addr %s134, 8
        %s136 = scalar_lea.vmem %s0, %s135
        %s137 = smul.u32 2, %s9
      $region28: #{two_conv_adapter.1} parent=23 // pred_fallthru
        _
    $region24: #{two_conv_adapter.1} parent=5 // pred_fallthru
      _
    %p138 = scmp.le.s32.totalorder 1, %s9
    %p139 = scmp.lt.s32.totalorder %s9, 3
    %p140 = pnand %p138, %p139
    %p141 = pneg %p140
    // Predicated region
    $region29: #{two_conv_adapter.1} parent=5 // pred_check
      _
    $region30: #{two_conv_adapter.1} parent=5 // pred_check_branch
      %143 = sbr.rel (%p140) target = $region32
    $region31: #{two_conv_adapter.1} parent=5 // pred_region
      %s144 = ssub.s32 %s9, 1
      %s145 = smul.u32 2, %s14
      %p146 = scmp.lt.s32.totalorder %s145, 3
      %s147 = scalar_select %p146, %s145, 3
      %s148 = smul.addr %s147, 2
      %s149 = smul.addr %s148, 8
      %s150 = scalar_lea.vmem %s0, %s149
      %p151 = pneg %p35
      %p152 = pneg %p32
      %p153 = pneg %p56
      %p154 = pneg %p53
      %p155 = pneg %p77
      %p156 = pneg %p74
      %p157 = pneg %p103
      %p158 = pneg %p100
      %s159 = smul.u32 2, %s14
      %p160 = scmp.lt.s32.totalorder %s159, 3
      %s161 = scalar_select %p160, %s159, 3
      %s162 = smul.addr %s161, 2
      %s163 = smul.addr %s162, 8
      %s164 = scalar_lea.vmem %s3, %s163
      %s165 = smul.u32 2, %s14
      %p166 = scmp.lt.s32.totalorder %s165, 3
      %s167 = scalar_select %p166, %s165, 3
      %s168 = smul.addr %s167, 2
      %s169 = smul.addr %s168, 8
      %s170 = scalar_lea.vmem %s0, %s169
      %s171 = smul.u32 2, %s14
      %s172 = smul.u32 2, %s14
      %p173 = scmp.lt.s32.totalorder %s172, 3
      %s174 = scalar_select %p173, %s172, 3
      %s175 = smul.addr %s174, 2
      %s176 = smul.addr %s175, 8
      %s177 = scalar_lea.vmem %s3, %s176
      %s178 = smul.u32 2, %s14
      %v179 = vlaneseq
      %v180 = vand.u32 %v179, 127
      %v181 = vadd.s32 %v180, 128
      %vm182 = vcmp.lt.s32.totalorder %v180, 0
      %v183 = vsub.s32 0, %v180
      %v184 = vsel %vm182, %v183, %v180
      %v185 = vshrl.u32 %v184, 4
      %v186 = vand.u32 %v184, 15
      %v187 = vsub.s32 0, %v186
      %v188 = vsel %vm182, %v187, %v186
      %vm189 = vcmp.lt.s32.totalorder %v181, 0
      %v190 = vsub.s32 0, %v181
      %v191 = vsel %vm189, %v190, %v181
      %v192 = vshrl.u32 %v191, 4
      %v193 = vand.u32 %v191, 15
      %v194 = vsub.s32 0, %v193
      %v195 = vsel %vm189, %v194, %v193
      %vm196 = vcmp.ne.s32.totalorder %v188, 0
      %vm197 = vcmp.ne.s32.totalorder %v195, 0
      %vm198 = vcmp.lt.s32.totalorder %v188, 0
      %vm199 = vcmp.lt.s32.totalorder %v195, 0
      %vm200 = vmand %vm198, %vm196
      %vm201 = vmand %vm199, %vm197
      %v202 = vadd.s32 %v188, 16
      %v203 = vadd.s32 %v195, 16
      %v204 = vsel %vm200, %v202, %v188
      %v205 = vsel %vm201, %v203, %v195
      %vm206 = vcmp.ge.s32.totalorder %v204, 1
      %vm207 = vcmp.ge.s32.totalorder %v205, 1
      %vm208 = vcmp.lt.s32.totalorder %v204, 15
      %vm209 = vcmp.lt.s32.totalorder %v205, 15
      %v210 = vld [vmem:[%s1] sm:$0xff]
      %v211 = vld [vmem:[%s2] sm:$0xff]
      %v212 = vld [vmem:[%s170] sm:$0xff]
      %v213 = vld [vmem:[%s170 + $0x8] sm:$0xff]
      %216 = vrot.lane.b32.xlu0 %v212, 1
      %v217 = vpop.permute.xlu0 %216
      %218 = vrot.lane.b32.xlu0 %v213, 1
      %v219 = vpop.permute.xlu0 %218
      %vm220 = vcmask 7168
      %v221 = vsel %vm220, %v217, %v219
      %v224 = vsel %vm220, 0.0, %v217
      %v225 = vsel %vm206, 1, 0
      %v226 = vsel %vm207, 1, 0
      %vm227 = vcmp.eq.s32.totalorder %v225, 1
      %vm228 = vcmp.eq.s32.totalorder %v226, 1
      %v229 = vsel %vm227, %v224, 0.0
      %v230 = vsel %vm228, %v221, 0.0
      %231 = vrot.lane.b32.xlu0 %v212, 127
      %v232 = vpop.permute.xlu0 %231
      %233 = vrot.lane.b32.xlu0 %v213, 127
      %v234 = vpop.permute.xlu0 %233
      %vm235 = vcmask 1039360
      %v236 = vsel %vm235, %v232, %v234
      %v239 = vsel %vm235, %v234, 0.0
      %v240 = vsel %vm208, 1, 0
      %v241 = vsel %vm209, 1, 0
      %vm242 = vcmp.eq.s32.totalorder %v240, 1
      %vm243 = vcmp.eq.s32.totalorder %v241, 1
      %v244 = vsel %vm242, %v236, 0.0
      %v245 = vsel %vm243, %v239, 0.0
      %248 = vrot.lane.b32.xlu0 %v229, 16
      %v249 = vpop.permute.xlu0 %248
      %250 = vrot.lane.b32.xlu0 %v230, 16
      %v251 = vpop.permute.xlu0 %250
      %vm252 = vcmask 130048
      %v253 = vsel %vm252, %v249, %v251
      %v256 = vsel %vm252, 0.0, %v249
      %257 = vrot.lane.b32.xlu0 %v212, 16
      %v258 = vpop.permute.xlu0 %257
      %259 = vrot.lane.b32.xlu0 %v213, 16
      %v260 = vpop.permute.xlu0 %259
      %v261 = vsel %vm252, %v258, %v260
      %v264 = vsel %vm252, 0.0, %v258
      %267 = vrot.lane.b32.xlu0 %v244, 16
      %v268 = vpop.permute.xlu0 %267
      %269 = vrot.lane.b32.xlu0 %v245, 16
      %v270 = vpop.permute.xlu0 %269
      %v271 = vsel %vm252, %v268, %v270
      %v274 = vsel %vm252, 0.0, %v268
      %275 = vrot.lane.b32.xlu0 %v229, 112
      %v276 = vpop.permute.xlu0 %275
      %277 = vrot.lane.b32.xlu0 %v230, 112
      %v278 = vpop.permute.xlu0 %277
      %vm279 = vcmask 916480
      %v280 = vsel %vm279, %v276, %v278
      %v283 = vsel %vm279, %v278, 0.0
      %284 = vrot.lane.b32.xlu0 %v212, 112
      %v285 = vpop.permute.xlu0 %284
      %286 = vrot.lane.b32.xlu0 %v213, 112
      %v287 = vpop.permute.xlu0 %286
      %v288 = vsel %vm279, %v285, %v287
      %v291 = vsel %vm279, %v287, 0.0
      %292 = vrot.lane.b32.xlu0 %v244, 112
      %v293 = vpop.permute.xlu0 %292
      %294 = vrot.lane.b32.xlu0 %v245, 112
      %v295 = vpop.permute.xlu0 %294
      %v296 = vsel %vm279, %v293, %v295
      %v299 = vsel %vm279, %v295, 0.0
      %vm300 = vcmask 588800
      %v302 = vsel %vm300, %v210, 0
      %304 = vmatprep.subr.mxu0 %v253
      %305 = vmatpush1.msra.mxu0 %v256
      %306 = vmatprep.subr.mxu0 %v261
      %307 = vmatpush1.msra.mxu0 %v264
      %308 = vmatprep.subr.mxu0 %v271
      %309 = vmatpush1.msra.mxu0 %v274
      %310 = vmatprep.subr.mxu0 %v230
      %311 = vmatpush1.msra.mxu0 %v229
      %312 = vmatprep.subr.mxu0 %v213
      %313 = vmatpush1.msra.mxu0 %v212
      %314 = vmatprep.subr.mxu0 %v245
      %315 = vmatpush1.msra.mxu0 %v244
      %316 = vmatprep.subr.mxu0 %v283
      %317 = vmatpush1.msra.mxu0 %v280
      %318 = vmatprep.subr.mxu0 %v291
      %319 = vmatpush1.msra.mxu0 %v288
      %320 = vmatprep.subr.mxu0 %v299
      %321 = vmatpush1.msra.mxu0 %v296
      %322 = vmatprep.subr.mxu0 0.0
      %323 = vmatpush1.msra.mxu0 0.0
      %324 = vmatprep.subr.mxu0 0.0
      %325 = vmatpush1.msra.mxu0 0.0
      %326 = vmatprep.subr.mxu0 0.0
      %327 = vmatpush1.msra.mxu0 0.0
      %328 = vmatprep.subr.mxu0 0.0
      %329 = vmatpush1.msra.mxu0 0.0
      %330 = vmatprep.subr.mxu0 0.0
      %331 = vmatpush1.msra.mxu0 0.0
      %332 = vmatprep.subr.mxu0 0.0
      %333 = vmatpush1.msra.mxu0 0.0
      %334 = vmatprep.subr.mxu0 0.0
      %335 = vmatpush1.msra.mxu0 0.0
      %336 = vmatprep.subr.mxu0 0.0
      %337 = vmatpush1.msra.mxu0 0.0
      %338 = vmatprep.subr.mxu0 0.0
      %339 = vmatpush1.msra.mxu0 0.0
      %340 = vmatprep.subr.mxu0 0.0
      %341 = vmatpush1.msra.mxu0 0.0
      %342 = vmatprep.subr.mxu0 0.0
      %343 = vmatpush1.msra.mxu0 0.0
      %344 = vmatprep.subr.mxu0 0.0
      %345 = vmatpush1.msra.mxu0 0.0
      %346 = vmatprep.subr.mxu0 0.0
      %347 = vmatpush1.msra.mxu0 0.0
      %348 = vmatprep.subr.mxu0 0.0
      %349 = vmatpush1.msra.mxu0 0.0
      %350 = vmatprep.subr.mxu0 0.0
      %351 = vmatpush1.msra.mxu0 0.0
      %352 = vmatprep.subr.mxu0 0.0
      %353 = vmatpush1.msra.mxu0 0.0
      %354 = vmatprep.subr.mxu0 0.0
      %355 = vmatpush1.msra.mxu0 0.0
      %356 = vmatprep.subr.mxu0 0.0
      %357 = vmatpush1.msra.mxu0 0.0
      %358 = vmatprep.subr.mxu0 0.0
      %359 = vmatpush1.msra.mxu0 0.0
      %360 = vmatprep.subr.mxu0 0.0
      %361 = vmatpush1.msra.mxu0 0.0
      %362 = vmatprep.subr.mxu0 0.0
      %363 = vmatpush1.msra.mxu0 0.0
      %364 = vmatprep.subr.mxu0 0.0
      %365 = vmatpush1.msra.mxu0 0.0
      %366 = vmatprep.subr.mxu0 0.0
      %367 = vmatpush1.msra.mxu0 0.0
      %368 = vmatprep.mubr.f32.mxu0 0.0
      %369 = vmatmul.mubr.f32.gmra.mrb[0].mxu0 %v302
      %v370 = vpop.f32.mrb[0].mxu0
      %v371 = vadd.f32 0.0, %v370
      %v372 = vpop.f32.mrb[0].mxu0
      %v373 = vadd.f32 0.0, %v372
      %374 = vdwg.mxu0
      %v375 = vmax.f32 %v371, 0.0
      %v376 = vmax.f32 %v373, 0.0
      %379 = vrot.lane.b32.xlu0 %v375, 1
      %v380 = vpop.permute.xlu0 %379
      %381 = vrot.lane.b32.xlu0 %v376, 1
      %v382 = vpop.permute.xlu0 %381
      %v383 = vsel %vm220, %v380, %v382
      %v386 = vsel %vm220, 0.0, %v380
      %v387 = vsel %vm227, %v386, 0.0
      %v388 = vsel %vm228, %v383, 0.0
      %389 = vrot.lane.b32.xlu0 %v375, 127
      %v390 = vpop.permute.xlu0 %389
      %391 = vrot.lane.b32.xlu0 %v376, 127
      %v392 = vpop.permute.xlu0 %391
      %v393 = vsel %vm235, %v390, %v392
      %v396 = vsel %vm235, %v392, 0.0
      %v397 = vsel %vm242, %v393, 0.0
      %v398 = vsel %vm243, %v396, 0.0
      %401 = vrot.lane.b32.xlu0 %v387, 16
      %v402 = vpop.permute.xlu0 %401
      %403 = vrot.lane.b32.xlu0 %v388, 16
      %v404 = vpop.permute.xlu0 %403
      %v405 = vsel %vm252, %v402, %v404
      %v408 = vsel %vm252, 0.0, %v402
      %409 = vrot.lane.b32.xlu0 %v375, 16
      %v410 = vpop.permute.xlu0 %409
      %411 = vrot.lane.b32.xlu0 %v376, 16
      %v412 = vpop.permute.xlu0 %411
      %v413 = vsel %vm252, %v410, %v412
      %v416 = vsel %vm252, 0.0, %v410
      %419 = vrot.lane.b32.xlu0 %v397, 16
      %v420 = vpop.permute.xlu0 %419
      %421 = vrot.lane.b32.xlu0 %v398, 16
      %v422 = vpop.permute.xlu0 %421
      %v423 = vsel %vm252, %v420, %v422
      %v426 = vsel %vm252, 0.0, %v420
      %427 = vrot.lane.b32.xlu0 %v387, 112
      %v428 = vpop.permute.xlu0 %427
      %429 = vrot.lane.b32.xlu0 %v388, 112
      %v430 = vpop.permute.xlu0 %429
      %v431 = vsel %vm279, %v428, %v430
      %v434 = vsel %vm279, %v430, 0.0
      %435 = vrot.lane.b32.xlu0 %v375, 112
      %v436 = vpop.permute.xlu0 %435
      %437 = vrot.lane.b32.xlu0 %v376, 112
      %v438 = vpop.permute.xlu0 %437
      %v439 = vsel %vm279, %v436, %v438
      %v442 = vsel %vm279, %v438, 0.0
      %443 = vrot.lane.b32.xlu0 %v397, 112
      %v444 = vpop.permute.xlu0 %443
      %445 = vrot.lane.b32.xlu0 %v398, 112
      %v446 = vpop.permute.xlu0 %445
      %v447 = vsel %vm279, %v444, %v446
      %v450 = vsel %vm279, %v446, 0.0
      %v452 = vsel %vm300, %v211, 0
      %454 = vmatprep.subr.mxu0 %v405
      %455 = vmatpush1.msra.mxu0 %v408
      %456 = vmatprep.subr.mxu0 %v413
      %457 = vmatpush1.msra.mxu0 %v416
      %458 = vmatprep.subr.mxu0 %v423
      %459 = vmatpush1.msra.mxu0 %v426
      %460 = vmatprep.subr.mxu0 %v388
      %461 = vmatpush1.msra.mxu0 %v387
      %462 = vmatprep.subr.mxu0 %v376
      %463 = vmatpush1.msra.mxu0 %v375
      %464 = vmatprep.subr.mxu0 %v398
      %465 = vmatpush1.msra.mxu0 %v397
      %466 = vmatprep.subr.mxu0 %v434
      %467 = vmatpush1.msra.mxu0 %v431
      %468 = vmatprep.subr.mxu0 %v442
      %469 = vmatpush1.msra.mxu0 %v439
      %470 = vmatprep.subr.mxu0 %v450
      %471 = vmatpush1.msra.mxu0 %v447
      %472 = vmatprep.subr.mxu0 0.0
      %473 = vmatpush1.msra.mxu0 0.0
      %474 = vmatprep.subr.mxu0 0.0
      %475 = vmatpush1.msra.mxu0 0.0
      %476 = vmatprep.subr.mxu0 0.0
      %477 = vmatpush1.msra.mxu0 0.0
      %478 = vmatprep.subr.mxu0 0.0
      %479 = vmatpush1.msra.mxu0 0.0
      %480 = vmatprep.subr.mxu0 0.0
      %481 = vmatpush1.msra.mxu0 0.0
      %482 = vmatprep.subr.mxu0 0.0
      %483 = vmatpush1.msra.mxu0 0.0
      %484 = vmatprep.subr.mxu0 0.0
      %485 = vmatpush1.msra.mxu0 0.0
      %486 = vmatprep.subr.mxu0 0.0
      %487 = vmatpush1.msra.mxu0 0.0
      %488 = vmatprep.subr.mxu0 0.0
      %489 = vmatpush1.msra.mxu0 0.0
      %490 = vmatprep.subr.mxu0 0.0
      %491 = vmatpush1.msra.mxu0 0.0
      %492 = vmatprep.subr.mxu0 0.0
      %493 = vmatpush1.msra.mxu0 0.0
      %494 = vmatprep.subr.mxu0 0.0
      %495 = vmatpush1.msra.mxu0 0.0
      %496 = vmatprep.subr.mxu0 0.0
      %497 = vmatpush1.msra.mxu0 0.0
      %498 = vmatprep.subr.mxu0 0.0
      %499 = vmatpush1.msra.mxu0 0.0
      %500 = vmatprep.subr.mxu0 0.0
      %501 = vmatpush1.msra.mxu0 0.0
      %502 = vmatprep.subr.mxu0 0.0
      %503 = vmatpush1.msra.mxu0 0.0
      %504 = vmatprep.subr.mxu0 0.0
      %505 = vmatpush1.msra.mxu0 0.0
      %506 = vmatprep.subr.mxu0 0.0
      %507 = vmatpush1.msra.mxu0 0.0
      %508 = vmatprep.subr.mxu0 0.0
      %509 = vmatpush1.msra.mxu0 0.0
      %510 = vmatprep.subr.mxu0 0.0
      %511 = vmatpush1.msra.mxu0 0.0
      %512 = vmatprep.subr.mxu0 0.0
      %513 = vmatpush1.msra.mxu0 0.0
      %514 = vmatprep.subr.mxu0 0.0
      %515 = vmatpush1.msra.mxu0 0.0
      %516 = vmatprep.subr.mxu0 0.0
      %517 = vmatpush1.msra.mxu0 0.0
      %518 = vmatprep.mubr.f32.mxu0 0.0
      %519 = vmatmul.mubr.f32.gmra.mrb[0].mxu0 %v452
      %v520 = vpop.f32.mrb[0].mxu0
      %v521 = vadd.f32 0.0, %v520
      %v522 = vpop.f32.mrb[0].mxu0
      %v523 = vadd.f32 0.0, %v522
      %524 = vdwg.mxu0
      %525 = vst [vmem:[%s177] sm:$0xff] %v521
      %526 = vst [vmem:[%s177 + $0x8] sm:$0xff] %v523
      %s527 = scalar_lea.vmem %s170, 16
      %v528 = vld [vmem:[%s527] sm:$0xff]
      %v529 = vld [vmem:[%s527 + $0x8] sm:$0xff]
      %532 = vrot.lane.b32.xlu0 %v528, 1
      %v533 = vpop.permute.xlu0 %532
      %534 = vrot.lane.b32.xlu0 %v529, 1
      %v535 = vpop.permute.xlu0 %534
      %v536 = vsel %vm220, %v533, %v535
      %v539 = vsel %vm220, 0.0, %v533
      %v540 = vsel %vm227, %v539, 0.0
      %v541 = vsel %vm228, %v536, 0.0
      %542 = vrot.lane.b32.xlu0 %v528, 127
      %v543 = vpop.permute.xlu0 %542
      %544 = vrot.lane.b32.xlu0 %v529, 127
      %v545 = vpop.permute.xlu0 %544
      %v546 = vsel %vm235, %v543, %v545
      %v549 = vsel %vm235, %v545, 0.0
      %v550 = vsel %vm242, %v546, 0.0
      %v551 = vsel %vm243, %v549, 0.0
      %554 = vrot.lane.b32.xlu0 %v540, 16
      %v555 = vpop.permute.xlu0 %554
      %556 = vrot.lane.b32.xlu0 %v541, 16
      %v557 = vpop.permute.xlu0 %556
      %v558 = vsel %vm252, %v555, %v557
      %v561 = vsel %vm252, 0.0, %v555
      %562 = vrot.lane.b32.xlu0 %v528, 16
      %v563 = vpop.permute.xlu0 %562
      %564 = vrot.lane.b32.xlu0 %v529, 16
      %v565 = vpop.permute.xlu0 %564
      %v566 = vsel %vm252, %v563, %v565
      %v569 = vsel %vm252, 0.0, %v563
      %572 = vrot.lane.b32.xlu0 %v550, 16
      %v573 = vpop.permute.xlu0 %572
      %574 = vrot.lane.b32.xlu0 %v551, 16
      %v575 = vpop.permute.xlu0 %574
      %v576 = vsel %vm252, %v573, %v575
      %v579 = vsel %vm252, 0.0, %v573
      %580 = vrot.lane.b32.xlu0 %v540, 112
      %v581 = vpop.permute.xlu0 %580
      %582 = vrot.lane.b32.xlu0 %v541, 112
      %v583 = vpop.permute.xlu0 %582
      %v584 = vsel %vm279, %v581, %v583
      %v587 = vsel %vm279, %v583, 0.0
      %588 = vrot.lane.b32.xlu0 %v528, 112
      %v589 = vpop.permute.xlu0 %588
      %590 = vrot.lane.b32.xlu0 %v529, 112
      %v591 = vpop.permute.xlu0 %590
      %v592 = vsel %vm279, %v589, %v591
      %v595 = vsel %vm279, %v591, 0.0
      %596 = vrot.lane.b32.xlu0 %v550, 112
      %v597 = vpop.permute.xlu0 %596
      %598 = vrot.lane.b32.xlu0 %v551, 112
      %v599 = vpop.permute.xlu0 %598
      %v600 = vsel %vm279, %v597, %v599
      %v603 = vsel %vm279, %v599, 0.0
      %604 = vmatprep.subr.mxu0 %v558
      %605 = vmatpush1.msra.mxu0 %v561
      %606 = vmatprep.subr.mxu0 %v566
      %607 = vmatpush1.msra.mxu0 %v569
      %608 = vmatprep.subr.mxu0 %v576
      %609 = vmatpush1.msra.mxu0 %v579
      %610 = vmatprep.subr.mxu0 %v541
      %611 = vmatpush1.msra.mxu0 %v540
      %612 = vmatprep.subr.mxu0 %v529
      %613 = vmatpush1.msra.mxu0 %v528
      %614 = vmatprep.subr.mxu0 %v551
      %615 = vmatpush1.msra.mxu0 %v550
      %616 = vmatprep.subr.mxu0 %v587
      %617 = vmatpush1.msra.mxu0 %v584
      %618 = vmatprep.subr.mxu0 %v595
      %619 = vmatpush1.msra.mxu0 %v592
      %620 = vmatprep.subr.mxu0 %v603
      %621 = vmatpush1.msra.mxu0 %v600
      %622 = vmatprep.subr.mxu0 0.0
      %623 = vmatpush1.msra.mxu0 0.0
      %624 = vmatprep.subr.mxu0 0.0
      %625 = vmatpush1.msra.mxu0 0.0
      %626 = vmatprep.subr.mxu0 0.0
      %627 = vmatpush1.msra.mxu0 0.0
      %628 = vmatprep.subr.mxu0 0.0
      %629 = vmatpush1.msra.mxu0 0.0
      %630 = vmatprep.subr.mxu0 0.0
      %631 = vmatpush1.msra.mxu0 0.0
      %632 = vmatprep.subr.mxu0 0.0
      %633 = vmatpush1.msra.mxu0 0.0
      %634 = vmatprep.subr.mxu0 0.0
      %635 = vmatpush1.msra.mxu0 0.0
      %636 = vmatprep.subr.mxu0 0.0
      %637 = vmatpush1.msra.mxu0 0.0
      %638 = vmatprep.subr.mxu0 0.0
      %639 = vmatpush1.msra.mxu0 0.0
      %640 = vmatprep.subr.mxu0 0.0
      %641 = vmatpush1.msra.mxu0 0.0
      %642 = vmatprep.subr.mxu0 0.0
      %643 = vmatpush1.msra.mxu0 0.0
      %644 = vmatprep.subr.mxu0 0.0
      %645 = vmatpush1.msra.mxu0 0.0
      %646 = vmatprep.subr.mxu0 0.0
      %647 = vmatpush1.msra.mxu0 0.0
      %648 = vmatprep.subr.mxu0 0.0
      %649 = vmatpush1.msra.mxu0 0.0
      %650 = vmatprep.subr.mxu0 0.0
      %651 = vmatpush1.msra.mxu0 0.0
      %652 = vmatprep.subr.mxu0 0.0
      %653 = vmatpush1.msra.mxu0 0.0
      %654 = vmatprep.subr.mxu0 0.0
      %655 = vmatpush1.msra.mxu0 0.0
      %656 = vmatprep.subr.mxu0 0.0
      %657 = vmatpush1.msra.mxu0 0.0
      %658 = vmatprep.subr.mxu0 0.0
      %659 = vmatpush1.msra.mxu0 0.0
      %660 = vmatprep.subr.mxu0 0.0
      %661 = vmatpush1.msra.mxu0 0.0
      %662 = vmatprep.subr.mxu0 0.0
      %663 = vmatpush1.msra.mxu0 0.0
      %664 = vmatprep.subr.mxu0 0.0
      %665 = vmatpush1.msra.mxu0 0.0
      %666 = vmatprep.subr.mxu0 0.0
      %667 = vmatpush1.msra.mxu0 0.0
      %668 = vmatprep.mubr.f32.mxu0 0.0
      %669 = vmatmul.mubr.f32.gmra.mrb[0].mxu0 %v302
      %v670 = vpop.f32.mrb[0].mxu0
      %v671 = vadd.f32 0.0, %v670
      %v672 = vpop.f32.mrb[0].mxu0
      %v673 = vadd.f32 0.0, %v672
      %674 = vdwg.mxu0
      %v675 = vmax.f32 %v671, 0.0
      %v676 = vmax.f32 %v673, 0.0
      %679 = vrot.lane.b32.xlu0 %v675, 1
      %v680 = vpop.permute.xlu0 %679
      %681 = vrot.lane.b32.xlu0 %v676, 1
      %v682 = vpop.permute.xlu0 %681
      %v683 = vsel %vm220, %v680, %v682
      %v686 = vsel %vm220, 0.0, %v680
      %v687 = vsel %vm227, %v686, 0.0
      %v688 = vsel %vm228, %v683, 0.0
      %689 = vrot.lane.b32.xlu0 %v675, 127
      %v690 = vpop.permute.xlu0 %689
      %691 = vrot.lane.b32.xlu0 %v676, 127
      %v692 = vpop.permute.xlu0 %691
      %v693 = vsel %vm235, %v690, %v692
      %v696 = vsel %vm235, %v692, 0.0
      %v697 = vsel %vm242, %v693, 0.0
      %v698 = vsel %vm243, %v696, 0.0
      %701 = vrot.lane.b32.xlu0 %v687, 16
      %v702 = vpop.permute.xlu0 %701
      %703 = vrot.lane.b32.xlu0 %v688, 16
      %v704 = vpop.permute.xlu0 %703
      %v705 = vsel %vm252, %v702, %v704
      %v708 = vsel %vm252, 0.0, %v702
      %709 = vrot.lane.b32.xlu0 %v675, 16
      %v710 = vpop.permute.xlu0 %709
      %711 = vrot.lane.b32.xlu0 %v676, 16
      %v712 = vpop.permute.xlu0 %711
      %v713 = vsel %vm252, %v710, %v712
      %v716 = vsel %vm252, 0.0, %v710
      %719 = vrot.lane.b32.xlu0 %v697, 16
      %v720 = vpop.permute.xlu0 %719
      %721 = vrot.lane.b32.xlu0 %v698, 16
      %v722 = vpop.permute.xlu0 %721
      %v723 = vsel %vm252, %v720, %v722
      %v726 = vsel %vm252, 0.0, %v720
      %727 = vrot.lane.b32.xlu0 %v687, 112
      %v728 = vpop.permute.xlu0 %727
      %729 = vrot.lane.b32.xlu0 %v688, 112
      %v730 = vpop.permute.xlu0 %729
      %v731 = vsel %vm279, %v728, %v730
      %v734 = vsel %vm279, %v730, 0.0
      %735 = vrot.lane.b32.xlu0 %v675, 112
      %v736 = vpop.permute.xlu0 %735
      %737 = vrot.lane.b32.xlu0 %v676, 112
      %v738 = vpop.permute.xlu0 %737
      %v739 = vsel %vm279, %v736, %v738
      %v742 = vsel %vm279, %v738, 0.0
      %743 = vrot.lane.b32.xlu0 %v697, 112
      %v744 = vpop.permute.xlu0 %743
      %745 = vrot.lane.b32.xlu0 %v698, 112
      %v746 = vpop.permute.xlu0 %745
      %v747 = vsel %vm279, %v744, %v746
      %v750 = vsel %vm279, %v746, 0.0
      %751 = vmatprep.subr.mxu0 %v705
      %752 = vmatpush1.msra.mxu0 %v708
      %753 = vmatprep.subr.mxu0 %v713
      %754 = vmatpush1.msra.mxu0 %v716
      %755 = vmatprep.subr.mxu0 %v723
      %756 = vmatpush1.msra.mxu0 %v726
      %757 = vmatprep.subr.mxu0 %v688
      %758 = vmatpush1.msra.mxu0 %v687
      %759 = vmatprep.subr.mxu0 %v676
      %760 = vmatpush1.msra.mxu0 %v675
      %761 = vmatprep.subr.mxu0 %v698
      %762 = vmatpush1.msra.mxu0 %v697
      %763 = vmatprep.subr.mxu0 %v734
      %764 = vmatpush1.msra.mxu0 %v731
      %765 = vmatprep.subr.mxu0 %v742
      %766 = vmatpush1.msra.mxu0 %v739
      %767 = vmatprep.subr.mxu0 %v750
      %768 = vmatpush1.msra.mxu0 %v747
      %769 = vmatprep.subr.mxu0 0.0
      %770 = vmatpush1.msra.mxu0 0.0
      %771 = vmatprep.subr.mxu0 0.0
      %772 = vmatpush1.msra.mxu0 0.0
      %773 = vmatprep.subr.mxu0 0.0
      %774 = vmatpush1.msra.mxu0 0.0
      %775 = vmatprep.subr.mxu0 0.0
      %776 = vmatpush1.msra.mxu0 0.0
      %777 = vmatprep.subr.mxu0 0.0
      %778 = vmatpush1.msra.mxu0 0.0
      %779 = vmatprep.subr.mxu0 0.0
      %780 = vmatpush1.msra.mxu0 0.0
      %781 = vmatprep.subr.mxu0 0.0
      %782 = vmatpush1.msra.mxu0 0.0
      %783 = vmatprep.subr.mxu0 0.0
      %784 = vmatpush1.msra.mxu0 0.0
      %785 = vmatprep.subr.mxu0 0.0
      %786 = vmatpush1.msra.mxu0 0.0
      %787 = vmatprep.subr.mxu0 0.0
      %788 = vmatpush1.msra.mxu0 0.0
      %789 = vmatprep.subr.mxu0 0.0
      %790 = vmatpush1.msra.mxu0 0.0
      %791 = vmatprep.subr.mxu0 0.0
      %792 = vmatpush1.msra.mxu0 0.0
      %793 = vmatprep.subr.mxu0 0.0
      %794 = vmatpush1.msra.mxu0 0.0
      %795 = vmatprep.subr.mxu0 0.0
      %796 = vmatpush1.msra.mxu0 0.0
      %797 = vmatprep.subr.mxu0 0.0
      %798 = vmatpush1.msra.mxu0 0.0
      %799 = vmatprep.subr.mxu0 0.0
      %800 = vmatpush1.msra.mxu0 0.0
      %801 = vmatprep.subr.mxu0 0.0
      %802 = vmatpush1.msra.mxu0 0.0
      %803 = vmatprep.subr.mxu0 0.0
      %804 = vmatpush1.msra.mxu0 0.0
      %805 = vmatprep.subr.mxu0 0.0
      %806 = vmatpush1.msra.mxu0 0.0
      %807 = vmatprep.subr.mxu0 0.0
      %808 = vmatpush1.msra.mxu0 0.0
      %809 = vmatprep.subr.mxu0 0.0
      %810 = vmatpush1.msra.mxu0 0.0
      %811 = vmatprep.subr.mxu0 0.0
      %812 = vmatpush1.msra.mxu0 0.0
      %813 = vmatprep.subr.mxu0 0.0
      %814 = vmatpush1.msra.mxu0 0.0
      %815 = vmatprep.mubr.f32.mxu0 0.0
      %816 = vmatmul.mubr.f32.gmra.mrb[0].mxu0 %v452
      %v817 = vpop.f32.mrb[0].mxu0
      %v818 = vadd.f32 0.0, %v817
      %v819 = vpop.f32.mrb[0].mxu0
      %v820 = vadd.f32 0.0, %v819
      %821 = vdwg.mxu0
      %s822 = scalar_lea.vmem %s177, 16
      %823 = vst [vmem:[%s822] sm:$0xff] %v818
      %824 = vst [vmem:[%s822 + $0x8] sm:$0xff] %v820
      %s825 = smul.u32 2, %s14
      %p826 = scmp.lt.s32.totalorder %s825, 3
      %s827 = scalar_select %p826, %s825, 3
      %s828 = smul.addr %s827, 2
      %s829 = smul.addr %s828, 8
      %s830 = scalar_lea.vmem %s3, %s829
      // Predicated region
      $region33: #{two_conv_adapter.1} parent=31 // pred_check
        %p831 = pneg %p100
      $region34: #{two_conv_adapter.1} parent=31 // pred_check_branch
        %833 = sbr.rel (%p831) target = $region36
      $region35: #{two_conv_adapter.1} parent=31 // pred_region
        %s834 = smul.u32 2, %s14
      $region36: #{two_conv_adapter.1} parent=31 // pred_fallthru
        _
    $region32: #{two_conv_adapter.1} parent=5 // pred_fallthru
      _
    %p835 = scmp.le.s32.totalorder 2, %s9
    // Predicated region
    $region37: #{two_conv_adapter.1} parent=5 // pred_check
      %p836 = pneg %p835
    $region38: #{two_conv_adapter.1} parent=5 // pred_check_branch
      %838 = sbr.rel (%p836) target = $region40
    $region39: #{two_conv_adapter.1} parent=5 // pred_region
      %s839 = ssub.s32 %s9, 2
      // Predicated region
      $region41: #{two_conv_adapter.1} parent=39 // pred_check
        %p840 = pneg %p106
      $region42: #{two_conv_adapter.1} parent=39 // pred_check_branch
        %842 = sbr.rel (%p840) target = $region44
      $region43: #{two_conv_adapter.1} parent=39 // pred_region
        %s843 = smul.u32 2, %s15
        %p844 = scmp.lt.s32.totalorder %s843, 3
        %s845 = scalar_select %p844, %s843, 3
        %s846 = smul.addr %s845, 2
        %s847 = smul.addr %s846, 8
        %s848 = scalar_lea.vmem %s3, %s847
      $region44: #{two_conv_adapter.1} parent=39 // pred_fallthru
        _
    $region40: #{two_conv_adapter.1} parent=5 // pred_fallthru
      _
  $region6: #{two_conv_adapter.1} parent=0 // loop_footer
    %s13 = sadd.s32 1, %s9
  $region7: #{two_conv_adapter.1} parent=0 // loop_footer_branch
    %8 = sbr.rel target = $region3
  $region8: #{two_conv_adapter.1} parent=0 // loop_exit
    _

</llo_original>
